<compile_context>
chip_gen: v7x
topology: tpu7x:2x2x1
jax: 0.10.0
libtpu: 0.0.40
codegen_flags: <defaults>
</compile_context>

<pallas_src>
import functools

import jax
import jax.numpy as jnp
from jax.experimental import pallas as pl
from jax.experimental.pallas import tpu as pltpu


def _cnn_kernel(x_ref, w1_ref, b1_ref, w2p_ref, b2p_ref, dw_ref, db_ref,
                pc_ref, ts_ref, *, B, C, E, Keff, Lc, Lw):
    # Packed layout: rows r = b*E + e on sublanes, time on lanes.
    # x_ref  : (C, R, Lp)   zero-padded input, replicated across ensembles
    # w1_ref : (Keff, C, R, 1) effective conv taps (avg_pool folded in)
    # b1_ref : (R, 1)
    # w2p_ref: (R, 2)       grouped 1x1 conv weight pairs [W2[2e], W2[2e+1]]
    # b2p_ref: (R, 2)       grouped 1x1 conv bias pairs
    # dw_ref : (R, 1)       W2[2e+1] - W2[2e]
    # db_ref : (R, 1)       b2[2e+1] - b2[2e]
    # pc_ref : (B, 4)       [pred0, pred1, conf0, conf1]
    # ts_ref : (B, Lw)      weighted-average sequence (valid lanes: l < Lc)
    R = B * E
    inv_e = 1.0 / float(E)

    # validity mask over conv-output lanes (tail lanes see zero padding only,
    # but ReLU(bias) can still be > 0 there, so mask max-reductions).
    lane_idx = jax.lax.broadcasted_iota(jnp.int32, (1, Lw), 1)
    lane_mask = (lane_idx < Lc).astype(jnp.float32)                   # (1, Lw)

    # ---- avg_pool1d(smooth,1) + Conv1d(C->E, K) + ReLU, folded into one
    # effective Keff-tap correlation.  Shifted reads x[l + d] are static
    # lane-offset slices of the padded slab (no roll, no wrap garbage).
    acc = jnp.zeros((R, Lw), jnp.float32)
    for c in range(C):                                 # C, Keff static -> unrolled
        xc = x_ref[c]                                                  # (R, Lp)
        for d in range(Keff):
            acc = acc + xc[:, d:d + Lw] * w1_ref[d, c]                 # (R,Lw)*(R,1)
    conv = jnp.maximum(acc + b1_ref[...], 0.0)                         # (R, Lw)

    # ---- stochastic_max_pool: drop_prob == 0 -> plain max over valid lanes.
    # TODO(synk): drop_prob > 0 would need a pltpu.prng_random_bits +/-1 mask.
    pooled = jnp.max(conv * lane_mask, axis=-1, keepdims=True)         # (R, 1)

    # ---- grouped 1x1 conv on the pooled value (both group outputs at once)
    mlp = pooled * w2p_ref[...] + b2p_ref[...]                         # (R, 2)

    # ---- weighted_average_of_ensembles: diff == t1 - t0 (mean-centering cancels)
    diff = conv * dw_ref[...] + db_ref[...]                            # (R, Lw)
    wts = jnp.max(jnp.abs(diff) * lane_mask, axis=-1, keepdims=True)   # (R, 1)

    pred_rows = []
    ts_rows = []
    for b in range(B):                                 # B static & small
        lo, hi = b * E, (b + 1) * E
        pred_rows.append(jnp.sum(mlp[lo:hi, :], axis=0, keepdims=True) * inv_e)
        w_b = wts[lo:hi, :]                                            # (E, 1)
        avg_b = jnp.sum(w_b, axis=0, keepdims=True) * inv_e            # (1, 1)
        w_b = w_b * ((w_b >= avg_b).astype(jnp.float32) + 0.01)
        num_b = jnp.sum(diff[lo:hi, :] * w_b, axis=0, keepdims=True)   # (1, Lw)
        den_b = jnp.sum(w_b, axis=0, keepdims=True) + 1e-8             # (1, 1)
        ts_rows.append(num_b / den_b)
    ts_ref[...] = jnp.concatenate(ts_rows, axis=0)                     # (B, Lw) store

    # ensemble_prediction (mean over ensembles) + softmax confidence,
    # packed into a single (B, 4) output buffer (one tiny output DMA).
    pred = jnp.concatenate(pred_rows, axis=0)                          # (B, 2)
    m = jnp.max(pred, axis=1, keepdims=True)
    ex = jnp.exp(pred - m)
    conf = ex / jnp.sum(ex, axis=1, keepdims=True)
    pc_ref[...] = jnp.concatenate([pred, conf], axis=1)                # (B, 4)


def prepare_params(w1, b1, w2, b2, batch, smooth=1):
    """One-time re-layout of the Conv1d parameters into the packed
    (rows = batch*ensembles on sublanes) layout.  avg_pool1d(smooth, stride=1)
    is folded into an effective conv kernel of length K + smooth - 1."""
    E, C, K = w1.shape
    s = int(smooth) if (smooth and int(smooth) >= 1) else 1
    Keff = K + s - 1
    # w_eff[e,c,d] = (1/s) * sum_{k+i=d, 0<=k<K, 0<=i<s} W1[e,c,k]
    w_eff = jnp.zeros((E, C, Keff), w1.dtype)
    for i in range(s):
        w_eff = w_eff.at[:, :, i:i + K].add(w1 * (1.0 / s))
    # row b*E + e holds ensemble e's parameters
    w1c = jnp.tile(jnp.transpose(w_eff, (2, 1, 0)), (1, 1, batch))[..., None]  # (Keff,C,R,1)
    b1c = jnp.tile(b1, (batch,))[:, None]                                      # (R, 1)
    # grouped 1x1 conv (groups=E): group e -> output channels (2e, 2e+1)
    w2_e2 = w2[:, 0, 0].reshape(E, 2)
    b2_e2 = b2.reshape(E, 2)
    w2p = jnp.tile(w2_e2, (batch, 1))                                          # (R, 2)
    b2p = jnp.tile(b2_e2, (batch, 1))                                          # (R, 2)
    dwc = jnp.tile(w2_e2[:, 1] - w2_e2[:, 0], (batch,))[:, None]               # (R, 1)
    dbc = jnp.tile(b2_e2[:, 1] - b2_e2[:, 0], (batch,))[:, None]               # (R, 1)
    return (w1c, b1c, w2p, b2p, dwc, dbc)


@jax.jit
def cnn_forward(x, params):
    """CNN.forward(x, training=True) with t=0, drop=0, first_derivative=False.

    x: (B, L, C_in) float32; params from prepare_params(..., smooth=s).
    Returns (ensemble_prediction (B,2), transformed_sequence (B,Lc,1),
             confidence (B,2)) with Lc = L - (K + smooth - 1) + 1.
    """
    w1c, b1c, w2p, b2p, dwc, dbc = params
    B, L, C = x.shape
    Keff = w1c.shape[0]
    R = b1c.shape[0]
    E = R // B
    Lc = L - Keff + 1                                  # valid output length
    Lw = max(128, pl.cdiv(Lc, 128) * 128)              # lane-dense compute width
    Lp = pl.cdiv(Lw + Keff - 1, 128) * 128             # padded input width
    assert Lp >= L and Lc >= 1

    # remove_nan_and_select_time: t=0, 'after', NaN-free input -> identity.
    # TODO(synk): data-dependent NaN-column dropping yields a dynamic length
    # and has no static Pallas block equivalent; inputs are assumed NaN-free.
    # TODO(synk): first_derivative=True path (channel doubling) not implemented
    # (module default is False).
    x_ncl = jnp.transpose(x, (0, 2, 1))                               # (B, C, L)
    x_pad = jnp.pad(x_ncl, ((0, 0), (0, 0), (0, Lp - L)))             # (B, C, Lp)
    x_pk = jnp.broadcast_to(x_pad[:, None], (B, E, C, Lp))
    x_pk = jnp.transpose(x_pk, (2, 0, 1, 3)).reshape(C, B * E, Lp)    # (C, R, Lp)

    kern = functools.partial(_cnn_kernel, B=B, C=C, E=E, Keff=Keff, Lc=Lc, Lw=Lw)
    vmem = pl.BlockSpec(memory_space=pltpu.MemorySpace.VMEM)
    pc, ts = pl.pallas_call(
        kern,
        out_shape=(jax.ShapeDtypeStruct((B, 4), jnp.float32),
                   jax.ShapeDtypeStruct((B, Lw), jnp.float32)),
        in_specs=[vmem] * 7,
        out_specs=(vmem, vmem),
    )(x_pk, w1c, b1c, w2p, b2p, dwc, dbc)

    pred = pc[:, 0:2]                                                 # ensemble_prediction
    conf = pc[:, 2:4]                                                 # confidence (softmax)
    transformed_sequence = ts[:, :Lc, None]                           # (B, Lc, 1)
    return pred, transformed_sequence, conf


def _ref_forward(x, w1, b1, w2, b2, smooth):
    """Pure-JAX reference of the PyTorch forward (t=0, drop=0, training=True)."""
    B, L, C = x.shape
    E, _, K = w1.shape
    s = int(smooth)
    xt = jnp.transpose(x, (0, 2, 1))                                   # (B, C, L)
    Ls = L - s + 1
    xs = jnp.mean(jnp.stack([xt[:, :, i:i + Ls] for i in range(s)], 0), 0)
    conv = jax.lax.conv_general_dilated(xs, w1, (1,), 'VALID',
                                        dimension_numbers=('NCH', 'OIH', 'NCH'))
    conv = jax.nn.relu(conv + b1[None, :, None])                       # (B, E, Lc)
    pooled = jnp.max(conv, axis=-1)                                    # (B, E)
    w2f, b2f = w2[:, 0, 0], b2
    z = jnp.stack([pooled * w2f[0::2] + b2f[0::2],
                   pooled * w2f[1::2] + b2f[1::2]], axis=-1)           # (B, E, 2)
    pred = jnp.mean(z, axis=1)
    conf = jax.nn.softmax(pred, axis=1)
    diff = conv * (w2f[1::2] - w2f[0::2])[None, :, None] \
         + (b2f[1::2] - b2f[0::2])[None, :, None]                      # (B, E, Lc)
    wts = jnp.max(jnp.abs(diff), axis=-1, keepdims=True)               # (B, E, 1)
    avg = jnp.mean(wts, axis=1, keepdims=True)
    wts = wts * ((wts >= avg).astype(jnp.float32) + 0.01)
    ts = jnp.sum(diff * wts, axis=1) / (jnp.sum(wts, axis=1) + 1e-8)   # (B, Lc)
    return pred, ts[:, :, None], conf


if __name__ == "__main__":
    B, L, C_IN = 2, 32, 1          # batch, sequence length, in_filters
    E, K = 4, 7                    # ensembles, conv kernel size
    SMOOTH = 2                     # avg_pool1d smoothing window

    key = jax.random.PRNGKey(0)
    kx, k1, k2, k3, k4 = jax.random.split(key, 5)
    x = jax.random.normal(kx, (B, L, C_IN), jnp.float32)
    # nn.Conv1d(in_filters, ensembles, kernel_size=K): weight (E, C_IN, K), bias (E,)
    w1 = jax.random.normal(k1, (E, C_IN, K), jnp.float32) * 0.3
    b1 = jax.random.normal(k2, (E,), jnp.float32) * 0.1
    # nn.Conv1d(E, 2E, kernel_size=1, groups=E): weight (2E, 1, 1), bias (2E,)
    w2 = jax.random.normal(k3, (2 * E, 1, 1), jnp.float32) * 0.3
    b2 = jax.random.normal(k4, (2 * E,), jnp.float32) * 0.1

    params = prepare_params(w1, b1, w2, b2, B, smooth=SMOOTH)   # one-time re-layout
    pred, ts, conf = cnn_forward(x, params)
    jax.block_until_ready((pred, ts, conf))

    Lc = L - SMOOTH + 1 - K + 1
    assert pred.shape == (B, 2)
    assert conf.shape == (B, 2)
    assert ts.shape == (B, Lc, 1)

    # correctness vs. pure-JAX reference of the PyTorch forward
    rp, rt, rc = _ref_forward(x, w1, b1, w2, b2, SMOOTH)
    assert jnp.allclose(pred, rp, atol=2e-4, rtol=2e-4)
    assert jnp.allclose(conf, rc, atol=2e-4, rtol=2e-4)
    assert jnp.allclose(ts, rt, atol=2e-4, rtol=2e-4)
    print("KERNEL_OK")
</pallas_src>

<mosaic_0001>
module attributes {stable_mosaic.version = 11 : i64} {
  func.func @_cnn_kernel(%arg0: memref<1x8x256xf32, #tpu.memory_space<vmem>>, %arg1: memref<8x1x8x1xf32, #tpu.memory_space<vmem>>, %arg2: memref<8x1xf32, #tpu.memory_space<vmem>>, %arg3: memref<8x2xf32, #tpu.memory_space<vmem>>, %arg4: memref<8x2xf32, #tpu.memory_space<vmem>>, %arg5: memref<8x1xf32, #tpu.memory_space<vmem>>, %arg6: memref<8x1xf32, #tpu.memory_space<vmem>>, %arg7: memref<2x4xf32, #tpu.memory_space<vmem>>, %arg8: memref<2x128xf32, #tpu.memory_space<vmem>>) attributes {dimension_semantics = [], scalar_prefetch = 0 : i64, scratch_operands = 0 : i64, tpu.core_type = #tpu.core_type<tc>} {
    %0 = tpu.iota {dimensions = array<i32: 1>} : vector<1x128xi32>
    %c25_i32 = arith.constant 25 : i32
    %1 = vector.broadcast %c25_i32 : i32 to vector<1x128xi32>
    %2 = arith.cmpi slt, %0, %1 : vector<1x128xi32>
    %3 = arith.extui %2 : vector<1x128xi1> to vector<1x128xi32>
    %4 = arith.sitofp %3 : vector<1x128xi32> to vector<1x128xf32>
    %cst = arith.constant 0.000000e+00 : f32
    %5 = vector.broadcast %cst : f32 to vector<8x128xf32>
    %c0 = arith.constant 0 : index
    %c0_0 = arith.constant 0 : index
    %c0_1 = arith.constant 0 : index
    %6 = vector.load %arg0[%c0, %c0_0, %c0_1] : memref<1x8x256xf32, #tpu.memory_space<vmem>>, vector<1x8x256xf32>
    %7 = vector.shape_cast %6 : vector<1x8x256xf32> to vector<8x256xf32>
    %8 = vector.extract_strided_slice %7 {offsets = [0, 0], sizes = [8, 128], strides = [1, 1]} : vector<8x256xf32> to vector<8x128xf32>
    %c0_2 = arith.constant 0 : index
    %c0_3 = arith.constant 0 : index
    %c0_4 = arith.constant 0 : index
    %c0_5 = arith.constant 0 : index
    %9 = vector.load %arg1[%c0_2, %c0_3, %c0_4, %c0_5] : memref<8x1x8x1xf32, #tpu.memory_space<vmem>>, vector<1x1x8x1xf32>
    %10 = vector.shape_cast %9 : vector<1x1x8x1xf32> to vector<8x1xf32>
    %11 = vector.broadcast %10 : vector<8x1xf32> to vector<8x128xf32>
    %12 = arith.mulf %8, %11 : vector<8x128xf32>
    %13 = arith.addf %5, %12 : vector<8x128xf32>
    %14 = vector.extract_strided_slice %7 {offsets = [0, 1], sizes = [8, 128], strides = [1, 1]} : vector<8x256xf32> to vector<8x128xf32>
    %c1 = arith.constant 1 : index
    %c0_6 = arith.constant 0 : index
    %c0_7 = arith.constant 0 : index
    %c0_8 = arith.constant 0 : index
    %15 = vector.load %arg1[%c1, %c0_6, %c0_7, %c0_8] : memref<8x1x8x1xf32, #tpu.memory_space<vmem>>, vector<1x1x8x1xf32>
    %16 = vector.shape_cast %15 : vector<1x1x8x1xf32> to vector<8x1xf32>
    %17 = vector.broadcast %16 : vector<8x1xf32> to vector<8x128xf32>
    %18 = arith.mulf %14, %17 : vector<8x128xf32>
    %19 = arith.addf %13, %18 : vector<8x128xf32>
    %20 = vector.extract_strided_slice %7 {offsets = [0, 2], sizes = [8, 128], strides = [1, 1]} : vector<8x256xf32> to vector<8x128xf32>
    %c2 = arith.constant 2 : index
    %c0_9 = arith.constant 0 : index
    %c0_10 = arith.constant 0 : index
    %c0_11 = arith.constant 0 : index
    %21 = vector.load %arg1[%c2, %c0_9, %c0_10, %c0_11] : memref<8x1x8x1xf32, #tpu.memory_space<vmem>>, vector<1x1x8x1xf32>
    %22 = vector.shape_cast %21 : vector<1x1x8x1xf32> to vector<8x1xf32>
    %23 = vector.broadcast %22 : vector<8x1xf32> to vector<8x128xf32>
    %24 = arith.mulf %20, %23 : vector<8x128xf32>
    %25 = arith.addf %19, %24 : vector<8x128xf32>
    %26 = vector.extract_strided_slice %7 {offsets = [0, 3], sizes = [8, 128], strides = [1, 1]} : vector<8x256xf32> to vector<8x128xf32>
    %c3 = arith.constant 3 : index
    %c0_12 = arith.constant 0 : index
    %c0_13 = arith.constant 0 : index
    %c0_14 = arith.constant 0 : index
    %27 = vector.load %arg1[%c3, %c0_12, %c0_13, %c0_14] : memref<8x1x8x1xf32, #tpu.memory_space<vmem>>, vector<1x1x8x1xf32>
    %28 = vector.shape_cast %27 : vector<1x1x8x1xf32> to vector<8x1xf32>
    %29 = vector.broadcast %28 : vector<8x1xf32> to vector<8x128xf32>
    %30 = arith.mulf %26, %29 : vector<8x128xf32>
    %31 = arith.addf %25, %30 : vector<8x128xf32>
    %32 = vector.extract_strided_slice %7 {offsets = [0, 4], sizes = [8, 128], strides = [1, 1]} : vector<8x256xf32> to vector<8x128xf32>
    %c4 = arith.constant 4 : index
    %c0_15 = arith.constant 0 : index
    %c0_16 = arith.constant 0 : index
    %c0_17 = arith.constant 0 : index
    %33 = vector.load %arg1[%c4, %c0_15, %c0_16, %c0_17] : memref<8x1x8x1xf32, #tpu.memory_space<vmem>>, vector<1x1x8x1xf32>
    %34 = vector.shape_cast %33 : vector<1x1x8x1xf32> to vector<8x1xf32>
    %35 = vector.broadcast %34 : vector<8x1xf32> to vector<8x128xf32>
    %36 = arith.mulf %32, %35 : vector<8x128xf32>
    %37 = arith.addf %31, %36 : vector<8x128xf32>
    %38 = vector.extract_strided_slice %7 {offsets = [0, 5], sizes = [8, 128], strides = [1, 1]} : vector<8x256xf32> to vector<8x128xf32>
    %c5 = arith.constant 5 : index
    %c0_18 = arith.constant 0 : index
    %c0_19 = arith.constant 0 : index
    %c0_20 = arith.constant 0 : index
    %39 = vector.load %arg1[%c5, %c0_18, %c0_19, %c0_20] : memref<8x1x8x1xf32, #tpu.memory_space<vmem>>, vector<1x1x8x1xf32>
    %40 = vector.shape_cast %39 : vector<1x1x8x1xf32> to vector<8x1xf32>
    %41 = vector.broadcast %40 : vector<8x1xf32> to vector<8x128xf32>
    %42 = arith.mulf %38, %41 : vector<8x128xf32>
    %43 = arith.addf %37, %42 : vector<8x128xf32>
    %44 = vector.extract_strided_slice %7 {offsets = [0, 6], sizes = [8, 128], strides = [1, 1]} : vector<8x256xf32> to vector<8x128xf32>
    %c6 = arith.constant 6 : index
    %c0_21 = arith.constant 0 : index
    %c0_22 = arith.constant 0 : index
    %c0_23 = arith.constant 0 : index
    %45 = vector.load %arg1[%c6, %c0_21, %c0_22, %c0_23] : memref<8x1x8x1xf32, #tpu.memory_space<vmem>>, vector<1x1x8x1xf32>
    %46 = vector.shape_cast %45 : vector<1x1x8x1xf32> to vector<8x1xf32>
    %47 = vector.broadcast %46 : vector<8x1xf32> to vector<8x128xf32>
    %48 = arith.mulf %44, %47 : vector<8x128xf32>
    %49 = arith.addf %43, %48 : vector<8x128xf32>
    %50 = vector.extract_strided_slice %7 {offsets = [0, 7], sizes = [8, 128], strides = [1, 1]} : vector<8x256xf32> to vector<8x128xf32>
    %c7 = arith.constant 7 : index
    %c0_24 = arith.constant 0 : index
    %c0_25 = arith.constant 0 : index
    %c0_26 = arith.constant 0 : index
    %51 = vector.load %arg1[%c7, %c0_24, %c0_25, %c0_26] : memref<8x1x8x1xf32, #tpu.memory_space<vmem>>, vector<1x1x8x1xf32>
    %52 = vector.shape_cast %51 : vector<1x1x8x1xf32> to vector<8x1xf32>
    %53 = vector.broadcast %52 : vector<8x1xf32> to vector<8x128xf32>
    %54 = arith.mulf %50, %53 : vector<8x128xf32>
    %55 = arith.addf %49, %54 : vector<8x128xf32>
    %c0_27 = arith.constant 0 : index
    %c0_28 = arith.constant 0 : index
    %56 = vector.load %arg2[%c0_27, %c0_28] : memref<8x1xf32, #tpu.memory_space<vmem>>, vector<8x1xf32>
    %57 = vector.broadcast %56 : vector<8x1xf32> to vector<8x128xf32>
    %58 = arith.addf %55, %57 : vector<8x128xf32>
    %cst_29 = arith.constant 0.000000e+00 : f32
    %59 = vector.broadcast %cst_29 : f32 to vector<8x128xf32>
    %60 = arith.maximumf %58, %59 : vector<8x128xf32>
    %61 = vector.broadcast %4 : vector<1x128xf32> to vector<8x128xf32>
    %62 = arith.mulf %60, %61 : vector<8x128xf32>
    %cst_30 = arith.constant dense<0xFF800000> : vector<8xf32>
    %63 = vector.multi_reduction <maximumf>, %62, %cst_30 [1] : vector<8x128xf32> to vector<8xf32>
    %64 = vector.shape_cast %63 : vector<8xf32> to vector<8x1xf32>
    %c0_31 = arith.constant 0 : index
    %c0_32 = arith.constant 0 : index
    %65 = vector.load %arg3[%c0_31, %c0_32] : memref<8x2xf32, #tpu.memory_space<vmem>>, vector<8x2xf32>
    %66 = vector.broadcast %64 : vector<8x1xf32> to vector<8x2xf32>
    %67 = arith.mulf %66, %65 : vector<8x2xf32>
    %c0_33 = arith.constant 0 : index
    %c0_34 = arith.constant 0 : index
    %68 = vector.load %arg4[%c0_33, %c0_34] : memref<8x2xf32, #tpu.memory_space<vmem>>, vector<8x2xf32>
    %69 = arith.addf %67, %68 : vector<8x2xf32>
    %c0_35 = arith.constant 0 : index
    %c0_36 = arith.constant 0 : index
    %70 = vector.load %arg5[%c0_35, %c0_36] : memref<8x1xf32, #tpu.memory_space<vmem>>, vector<8x1xf32>
    %71 = vector.broadcast %70 : vector<8x1xf32> to vector<8x128xf32>
    %72 = arith.mulf %60, %71 : vector<8x128xf32>
    %c0_37 = arith.constant 0 : index
    %c0_38 = arith.constant 0 : index
    %73 = vector.load %arg6[%c0_37, %c0_38] : memref<8x1xf32, #tpu.memory_space<vmem>>, vector<8x1xf32>
    %74 = vector.broadcast %73 : vector<8x1xf32> to vector<8x128xf32>
    %75 = arith.addf %72, %74 : vector<8x128xf32>
    %76 = math.absf %75 : vector<8x128xf32>
    %77 = vector.broadcast %4 : vector<1x128xf32> to vector<8x128xf32>
    %78 = arith.mulf %76, %77 : vector<8x128xf32>
    %cst_39 = arith.constant dense<0xFF800000> : vector<8xf32>
    %79 = vector.multi_reduction <maximumf>, %78, %cst_39 [1] : vector<8x128xf32> to vector<8xf32>
    %80 = vector.shape_cast %79 : vector<8xf32> to vector<8x1xf32>
    %81 = vector.extract_strided_slice %69 {offsets = [0, 0], sizes = [4, 2], strides = [1, 1]} : vector<8x2xf32> to vector<4x2xf32>
    %cst_40 = arith.constant dense<0.000000e+00> : vector<2xf32>
    %82 = vector.multi_reduction <add>, %81, %cst_40 [0] : vector<4x2xf32> to vector<2xf32>
    %83 = vector.shape_cast %82 : vector<2xf32> to vector<1x2xf32>
    %cst_41 = arith.constant 2.500000e-01 : f32
    %84 = vector.broadcast %cst_41 : f32 to vector<1x2xf32>
    %85 = arith.mulf %83, %84 : vector<1x2xf32>
    %86 = vector.extract_strided_slice %80 {offsets = [0, 0], sizes = [4, 1], strides = [1, 1]} : vector<8x1xf32> to vector<4x1xf32>
    %cst_42 = arith.constant dense<0.000000e+00> : vector<1xf32>
    %87 = vector.multi_reduction <add>, %86, %cst_42 [0] : vector<4x1xf32> to vector<1xf32>
    %88 = vector.shape_cast %87 : vector<1xf32> to vector<1x1xf32>
    %cst_43 = arith.constant 2.500000e-01 : f32
    %89 = vector.broadcast %cst_43 : f32 to vector<1x1xf32>
    %90 = arith.mulf %88, %89 : vector<1x1xf32>
    %91 = vector.broadcast %90 : vector<1x1xf32> to vector<4x1xf32>
    %92 = arith.cmpf oge, %86, %91 : vector<4x1xf32>
    %93 = arith.extui %92 : vector<4x1xi1> to vector<4x1xi32>
    %94 = arith.sitofp %93 : vector<4x1xi32> to vector<4x1xf32>
    %cst_44 = arith.constant 0.00999999977 : f32
    %95 = vector.broadcast %cst_44 : f32 to vector<4x1xf32>
    %96 = arith.addf %94, %95 : vector<4x1xf32>
    %97 = arith.mulf %86, %96 : vector<4x1xf32>
    %98 = vector.extract_strided_slice %75 {offsets = [0, 0], sizes = [4, 128], strides = [1, 1]} : vector<8x128xf32> to vector<4x128xf32>
    %99 = vector.broadcast %97 : vector<4x1xf32> to vector<4x128xf32>
    %100 = arith.mulf %98, %99 : vector<4x128xf32>
    %cst_45 = arith.constant dense<0.000000e+00> : vector<128xf32>
    %101 = vector.multi_reduction <add>, %100, %cst_45 [0] : vector<4x128xf32> to vector<128xf32>
    %102 = vector.shape_cast %101 : vector<128xf32> to vector<1x128xf32>
    %cst_46 = arith.constant dense<0.000000e+00> : vector<1xf32>
    %103 = vector.multi_reduction <add>, %97, %cst_46 [0] : vector<4x1xf32> to vector<1xf32>
    %104 = vector.shape_cast %103 : vector<1xf32> to vector<1x1xf32>
    %cst_47 = arith.constant 9.99999993E-9 : f32
    %105 = vector.broadcast %cst_47 : f32 to vector<1x1xf32>
    %106 = arith.addf %104, %105 : vector<1x1xf32>
    %107 = vector.broadcast %106 : vector<1x1xf32> to vector<1x128xf32>
    %108 = arith.divf %102, %107 : vector<1x128xf32>
    %109 = vector.extract_strided_slice %69 {offsets = [4, 0], sizes = [4, 2], strides = [1, 1]} : vector<8x2xf32> to vector<4x2xf32>
    %cst_48 = arith.constant dense<0.000000e+00> : vector<2xf32>
    %110 = vector.multi_reduction <add>, %109, %cst_48 [0] : vector<4x2xf32> to vector<2xf32>
    %111 = vector.shape_cast %110 : vector<2xf32> to vector<1x2xf32>
    %cst_49 = arith.constant 2.500000e-01 : f32
    %112 = vector.broadcast %cst_49 : f32 to vector<1x2xf32>
    %113 = arith.mulf %111, %112 : vector<1x2xf32>
    %114 = vector.extract_strided_slice %80 {offsets = [4, 0], sizes = [4, 1], strides = [1, 1]} : vector<8x1xf32> to vector<4x1xf32>
    %cst_50 = arith.constant dense<0.000000e+00> : vector<1xf32>
    %115 = vector.multi_reduction <add>, %114, %cst_50 [0] : vector<4x1xf32> to vector<1xf32>
    %116 = vector.shape_cast %115 : vector<1xf32> to vector<1x1xf32>
    %cst_51 = arith.constant 2.500000e-01 : f32
    %117 = vector.broadcast %cst_51 : f32 to vector<1x1xf32>
    %118 = arith.mulf %116, %117 : vector<1x1xf32>
    %119 = vector.broadcast %118 : vector<1x1xf32> to vector<4x1xf32>
    %120 = arith.cmpf oge, %114, %119 : vector<4x1xf32>
    %121 = arith.extui %120 : vector<4x1xi1> to vector<4x1xi32>
    %122 = arith.sitofp %121 : vector<4x1xi32> to vector<4x1xf32>
    %cst_52 = arith.constant 0.00999999977 : f32
    %123 = vector.broadcast %cst_52 : f32 to vector<4x1xf32>
    %124 = arith.addf %122, %123 : vector<4x1xf32>
    %125 = arith.mulf %114, %124 : vector<4x1xf32>
    %126 = vector.extract_strided_slice %75 {offsets = [4, 0], sizes = [4, 128], strides = [1, 1]} : vector<8x128xf32> to vector<4x128xf32>
    %127 = vector.broadcast %125 : vector<4x1xf32> to vector<4x128xf32>
    %128 = arith.mulf %126, %127 : vector<4x128xf32>
    %cst_53 = arith.constant dense<0.000000e+00> : vector<128xf32>
    %129 = vector.multi_reduction <add>, %128, %cst_53 [0] : vector<4x128xf32> to vector<128xf32>
    %130 = vector.shape_cast %129 : vector<128xf32> to vector<1x128xf32>
    %cst_54 = arith.constant dense<0.000000e+00> : vector<1xf32>
    %131 = vector.multi_reduction <add>, %125, %cst_54 [0] : vector<4x1xf32> to vector<1xf32>
    %132 = vector.shape_cast %131 : vector<1xf32> to vector<1x1xf32>
    %cst_55 = arith.constant 9.99999993E-9 : f32
    %133 = vector.broadcast %cst_55 : f32 to vector<1x1xf32>
    %134 = arith.addf %132, %133 : vector<1x1xf32>
    %135 = vector.broadcast %134 : vector<1x1xf32> to vector<1x128xf32>
    %136 = arith.divf %130, %135 : vector<1x128xf32>
    %137 = tpu.concatenate %108, %136 in 0 : vector<1x128xf32>, vector<1x128xf32> -> vector<2x128xf32>
    %c0_56 = arith.constant 0 : index
    %c0_57 = arith.constant 0 : index
    %138 = vector.load %arg8[%c0_56, %c0_57] : memref<2x128xf32, #tpu.memory_space<vmem>>, vector<2x128xf32>
    tpu.vector_store %arg8[%c0_56, %c0_57], %137 {strides = array<i32>} : memref<2x128xf32, #tpu.memory_space<vmem>>, vector<2x128xf32>,
    %139 = tpu.concatenate %85, %113 in 0 : vector<1x2xf32>, vector<1x2xf32> -> vector<2x2xf32>
    %cst_58 = arith.constant dense<0xFF800000> : vector<2xf32>
    %140 = vector.multi_reduction <maximumf>, %139, %cst_58 [1] : vector<2x2xf32> to vector<2xf32>
    %141 = vector.shape_cast %140 : vector<2xf32> to vector<2x1xf32>
    %142 = vector.broadcast %141 : vector<2x1xf32> to vector<2x2xf32>
    %143 = arith.subf %139, %142 : vector<2x2xf32>
    %144 = math.exp %143 : vector<2x2xf32>
    %cst_59 = arith.constant dense<0.000000e+00> : vector<2xf32>
    %145 = vector.multi_reduction <add>, %144, %cst_59 [1] : vector<2x2xf32> to vector<2xf32>
    %146 = vector.shape_cast %145 : vector<2xf32> to vector<2x1xf32>
    %147 = vector.broadcast %146 : vector<2x1xf32> to vector<2x2xf32>
    %148 = arith.divf %144, %147 : vector<2x2xf32>
    %149 = tpu.concatenate %139, %148 in 1 : vector<2x2xf32>, vector<2x2xf32> -> vector<2x4xf32>
    %c0_60 = arith.constant 0 : index
    %c0_61 = arith.constant 0 : index
    %150 = vector.load %arg7[%c0_60, %c0_61] : memref<2x4xf32, #tpu.memory_space<vmem>>, vector<2x4xf32>
    tpu.vector_store %arg7[%c0_60, %c0_61], %149 {strides = array<i32>} : memref<2x4xf32, #tpu.memory_space<vmem>>, vector<2x4xf32>,
    return
  }
}

</mosaic_0001>

<llo_original>
// kernel: cnn_forward.1
$region0: #{cnn_forward.1}
  #allocation0 [shape = 'u32[]', space=smem, size = 0x4, offset = 0x4, fixed_abs, tag = 'smem constant byte address 0x4 - core index']
  #allocation1 [shape = 'u32[144,128]{1,0:T(1,128)}', space=vmem, size = 0x12000, scoped, tag = 'internal scratch']
  %s0 = inlined_call_operand.vmem [shape: f32[1,8,256], index: 0, kind: input, shape index: {}]
  %s1 = inlined_call_operand.vmem [shape: f32[8,1,8,1], index: 1, kind: input, shape index: {}]
  %s2 = inlined_call_operand.vmem [shape: f32[8,1], index: 2, kind: input, shape index: {}]
  %s3 = inlined_call_operand.vmem [shape: f32[8,2], index: 3, kind: input, shape index: {}]
  %s4 = inlined_call_operand.vmem [shape: f32[8,2], index: 4, kind: input, shape index: {}]
  %s5 = inlined_call_operand.vmem [shape: f32[8,1], index: 5, kind: input, shape index: {}]
  %s6 = inlined_call_operand.vmem [shape: f32[8,1], index: 6, kind: input, shape index: {}]
  %s7 = inlined_call_operand.vmem [shape: f32[2,4], index: 7, kind: output, shape index: {0}]
  %s8 = inlined_call_operand.hbm [shape: f32[2,128], index: 8, kind: output, shape index: {1}]
  %9 = xla_tuple %s7, %s8
  %s10 = sld [smem:[#allocation0]]
  $region46: #{cnn_forward.1} parent=0
    _
  %s12 = ssub.s32 1, %s10
  %s13 = scalar_select 0, %s12, %s10
  $region1: #{cnn_forward.1} parent=0
    #allocation2 [shape = 'u8[1024]{0}', space=vmem, size = 0x400, scoped, tag = 'output window, operand 1, single buffered']
    #allocation3 [shape = 's32[1]{0}', space=sflag, size = 0x4, scoped, tag = 'scoped memory for cnn_forward.1']
    %14 = vsyncpa [#allocation3], 0
    // Predicated region
    $region2: #{cnn_forward.1} parent=1 // pred_check
      _
    $region3: #{cnn_forward.1} parent=1 // pred_check_branch
      %16 = sbr.rel (0) target = $region5
    $region4: #{cnn_forward.1} parent=1 // pred_region
      _
    $region5: #{cnn_forward.1} parent=1 // pred_fallthru
      _
    // Predicated region
    $region6: #{cnn_forward.1} parent=1 // pred_check
      _
    $region7: #{cnn_forward.1} parent=1 // pred_check_branch
      %18 = sbr.rel (0) target = $region9
    $region8: #{cnn_forward.1} parent=1 // pred_region
      _
    $region9: #{cnn_forward.1} parent=1 // pred_fallthru
      _
    // Predicated region
    $region10: #{cnn_forward.1} parent=1 // pred_check
      _
    $region11: #{cnn_forward.1} parent=1 // pred_check_branch
      %20 = sbr.rel (0) target = $region13
    $region12: #{cnn_forward.1} parent=1 // pred_region
      _
    $region13: #{cnn_forward.1} parent=1 // pred_fallthru
      _
    // Predicated region
    $region14: #{cnn_forward.1} parent=1 // pred_check
      _
    $region15: #{cnn_forward.1} parent=1 // pred_check_branch
      %22 = sbr.rel (0) target = $region17
    $region16: #{cnn_forward.1} parent=1 // pred_region
      _
    $region17: #{cnn_forward.1} parent=1 // pred_fallthru
      _
    // Predicated region
    $region18: #{cnn_forward.1} parent=1 // pred_check
      _
    $region19: #{cnn_forward.1} parent=1 // pred_check_branch
      %24 = sbr.rel (0) target = $region21
    $region20: #{cnn_forward.1} parent=1 // pred_region
      _
    $region21: #{cnn_forward.1} parent=1 // pred_fallthru
      _
    // Predicated region
    $region22: #{cnn_forward.1} parent=1 // pred_check
      _
    $region23: #{cnn_forward.1} parent=1 // pred_check_branch
      %26 = sbr.rel (0) target = $region25
    $region24: #{cnn_forward.1} parent=1 // pred_region
      _
    $region25: #{cnn_forward.1} parent=1 // pred_fallthru
      _
    // Predicated region
    $region26: #{cnn_forward.1} parent=1 // pred_check
      _
    $region27: #{cnn_forward.1} parent=1 // pred_check_branch
      %28 = sbr.rel (0) target = $region29
    $region28: #{cnn_forward.1} parent=1 // pred_region
      _
    $region29: #{cnn_forward.1} parent=1 // pred_fallthru
      _
    %v29 = vlaneseq
    %v30 = vand.u32 %v29, 127
    %vm31 = vcmp.lt.s32.totalorder %v30, 25
    %v32 = vsel %vm31, 1, 0
    %v33 = vcvt.s32.f32 %v32
    %v34 = vld [vmem:[%s0] sm:$0xff]
    %v35 = vld [vmem:[%s0 + $0x8] sm:$0xff]
    %v36 = vld [vmem:[%s1] sm:$0xff]
    %38 = vset.pattern.permute.xlu0 0
    %39 = vperm.xlu0 %38, %v36
    %v40 = vpop.permute.xlu0 %39
    %v42 = vmul.f32 %v34, %v40
    %v43 = vadd.f32 %v42, 0.0
    %s44 = scalar_lea.vmem %s1, 8
    %v45 = vld [vmem:[%s44] sm:$0xff]
    %47 = vset.pattern.permute.xlu0 0
    %48 = vperm.xlu0 %47, %v45
    %v49 = vpop.permute.xlu0 %48
    %v51 = vmul.f32 %v34, %v49
    %v52 = vmul.f32 %v35, %v49
    %55 = vrot.lane.b32.xlu0 %v51, 127
    %v56 = vpop.permute.xlu0 %55
    %57 = vrot.lane.b32.xlu0 %v52, 127
    %v58 = vpop.permute.xlu0 %57
    %vm59 = vcmask 1039360
    %v60 = vsel %vm59, %v56, %v58
    %v62 = vadd.f32 %v43, %v60
    %s63 = scalar_lea.vmem %s1, 16
    %v64 = vld [vmem:[%s63] sm:$0xff]
    %66 = vset.pattern.permute.xlu0 0
    %67 = vperm.xlu0 %66, %v64
    %v68 = vpop.permute.xlu0 %67
    %v70 = vmul.f32 %v34, %v68
    %v71 = vmul.f32 %v35, %v68
    %74 = vrot.lane.b32.xlu0 %v70, 126
    %v75 = vpop.permute.xlu0 %74
    %76 = vrot.lane.b32.xlu0 %v71, 126
    %v77 = vpop.permute.xlu0 %76
    %vm78 = vcmask 1031168
    %v79 = vsel %vm78, %v75, %v77
    %v81 = vadd.f32 %v62, %v79
    %s82 = scalar_lea.vmem %s1, 24
    %v83 = vld [vmem:[%s82] sm:$0xff]
    %85 = vset.pattern.permute.xlu0 0
    %86 = vperm.xlu0 %85, %v83
    %v87 = vpop.permute.xlu0 %86
    %v89 = vmul.f32 %v34, %v87
    %v90 = vmul.f32 %v35, %v87
    %93 = vrot.lane.b32.xlu0 %v89, 125
    %v94 = vpop.permute.xlu0 %93
    %95 = vrot.lane.b32.xlu0 %v90, 125
    %v96 = vpop.permute.xlu0 %95
    %vm97 = vcmask 1022976
    %v98 = vsel %vm97, %v94, %v96
    %v100 = vadd.f32 %v81, %v98
    %s101 = scalar_lea.vmem %s1, 32
    %v102 = vld [vmem:[%s101] sm:$0xff]
    %104 = vset.pattern.permute.xlu0 0
    %105 = vperm.xlu0 %104, %v102
    %v106 = vpop.permute.xlu0 %105
    %v108 = vmul.f32 %v34, %v106
    %v109 = vmul.f32 %v35, %v106
    %112 = vrot.lane.b32.xlu0 %v108, 124
    %v113 = vpop.permute.xlu0 %112
    %114 = vrot.lane.b32.xlu0 %v109, 124
    %v115 = vpop.permute.xlu0 %114
    %vm116 = vcmask 1014784
    %v117 = vsel %vm116, %v113, %v115
    %v119 = vadd.f32 %v100, %v117
    %s120 = scalar_lea.vmem %s1, 40
    %v121 = vld [vmem:[%s120] sm:$0xff]
    %123 = vset.pattern.permute.xlu0 0
    %124 = vperm.xlu0 %123, %v121
    %v125 = vpop.permute.xlu0 %124
    %v127 = vmul.f32 %v34, %v125
    %v128 = vmul.f32 %v35, %v125
    %131 = vrot.lane.b32.xlu0 %v127, 123
    %v132 = vpop.permute.xlu0 %131
    %133 = vrot.lane.b32.xlu0 %v128, 123
    %v134 = vpop.permute.xlu0 %133
    %vm135 = vcmask 1006592
    %v136 = vsel %vm135, %v132, %v134
    %v138 = vadd.f32 %v119, %v136
    %s139 = scalar_lea.vmem %s1, 48
    %v140 = vld [vmem:[%s139] sm:$0xff]
    %142 = vset.pattern.permute.xlu0 0
    %143 = vperm.xlu0 %142, %v140
    %v144 = vpop.permute.xlu0 %143
    %v146 = vmul.f32 %v34, %v144
    %v147 = vmul.f32 %v35, %v144
    %150 = vrot.lane.b32.xlu0 %v146, 122
    %v151 = vpop.permute.xlu0 %150
    %152 = vrot.lane.b32.xlu0 %v147, 122
    %v153 = vpop.permute.xlu0 %152
    %vm154 = vcmask 998400
    %v155 = vsel %vm154, %v151, %v153
    %v157 = vadd.f32 %v138, %v155
    %s158 = scalar_lea.vmem %s1, 56
    %v159 = vld [vmem:[%s158] sm:$0xff]
    %161 = vset.pattern.permute.xlu0 0
    %162 = vperm.xlu0 %161, %v159
    %v163 = vpop.permute.xlu0 %162
    %v165 = vmul.f32 %v34, %v163
    %v166 = vmul.f32 %v35, %v163
    %169 = vrot.lane.b32.xlu0 %v165, 121
    %v170 = vpop.permute.xlu0 %169
    %171 = vrot.lane.b32.xlu0 %v166, 121
    %v172 = vpop.permute.xlu0 %171
    %vm173 = vcmask 990208
    %v174 = vsel %vm173, %v170, %v172
    %v176 = vadd.f32 %v157, %v174
    %v177 = vld [vmem:[%s2] sm:$0xff]
    %179 = vset.pattern.permute.xlu0 0
    %180 = vperm.xlu0 %179, %v177
    %v181 = vpop.permute.xlu0 %180
    %v183 = vadd.f32 %v176, %v181
    %v184 = vmax.f32 %v183, 0.0
    %v185 = vmul.f32 %v184, %v33
    %186 = vmax.xlane.f32.xlu0 %v185
    %v187 = vpop.xlane.xlu0 %186
    %v188 = vld [vmem:[%s3] sm:$0xff]
    %v189 = vmul.f32 %v187, %v188
    %v190 = vld [vmem:[%s4] sm:$0xff]
    %v191 = vadd.f32 %v189, %v190
    %v192 = vld [vmem:[%s5] sm:$0xff]
    %194 = vset.pattern.permute.xlu0 0
    %195 = vperm.xlu0 %194, %v192
    %v196 = vpop.permute.xlu0 %195
    %v198 = vmul.f32 %v184, %v196
    %v199 = vld [vmem:[%s6] sm:$0xff]
    %201 = vset.pattern.permute.xlu0 0
    %202 = vperm.xlu0 %201, %v199
    %v203 = vpop.permute.xlu0 %202
    %v205 = vadd.f32 %v198, %v203
    %v206 = vand.u32 2147483647, %v205
    %v207 = vmul.f32 %v206, %v33
    %208 = vmax.xlane.f32.xlu0 %v207
    %v209 = vpop.xlane.xlu0 %208
    %vm210 = vcmask 11264
    %v211 = vsel %vm210, %v191, 0.0
    %v212 = vrot.slane %v211, 4
    %v213 = vadd.f32 %v211, %v212
    %v214 = vrot.slane %v213, 2
    %v215 = vadd.f32 %v213, %v214
    %v216 = vrot.slane %v215, 1
    %v217 = vadd.f32 %v215, %v216
    %v218 = vmul.f32 %v217, 0.25
    %vm219 = vcmask 1043456
    %v220 = vsel %vm219, %v209, 0.0
    %v221 = vrot.slane %v220, 4
    %v222 = vadd.f32 %v220, %v221
    %v223 = vrot.slane %v222, 2
    %v224 = vadd.f32 %v222, %v223
    %v225 = vrot.slane %v224, 1
    %v226 = vadd.f32 %v224, %v225
    %v227 = vmul.f32 %v226, 0.25
    %vm228 = vcmp.ge.f32.partialorder %v209, %v227
    %v229 = vsel %vm228, 1, 0
    %v230 = vcvt.s32.f32 %v229
    %v231 = vadd.f32 %v230, 0.01
    %v232 = vmul.f32 %v209, %v231
    %v233 = vmul.f32 %v205, %v232
    %v234 = vsel %vm219, %v233, 0.0
    %v235 = vrot.slane %v234, 4
    %v236 = vadd.f32 %v234, %v235
    %v237 = vrot.slane %v236, 2
    %v238 = vadd.f32 %v236, %v237
    %v239 = vrot.slane %v238, 1
    %v240 = vadd.f32 %v238, %v239
    %v241 = vsel %vm219, %v232, 0.0
    %v242 = vrot.slane %v241, 4
    %v243 = vadd.f32 %v241, %v242
    %v244 = vrot.slane %v243, 2
    %v245 = vadd.f32 %v243, %v244
    %v246 = vrot.slane %v245, 1
    %v247 = vadd.f32 %v245, %v246
    %v248 = vadd.f32 %v247, 1e-08
    %v249 = vrcp.pop %v248
    %v250 = vmul.f32 %v240, %v249
    %v252 = vrot.slane %v191, 4
    %v254 = vsel %vm210, %v252, 0.0
    %v255 = vrot.slane %v254, 4
    %v256 = vadd.f32 %v254, %v255
    %v257 = vrot.slane %v256, 2
    %v258 = vadd.f32 %v256, %v257
    %v259 = vrot.slane %v258, 1
    %v260 = vadd.f32 %v258, %v259
    %v261 = vmul.f32 %v260, 0.25
    %v263 = vrot.slane %v209, 4
    %v265 = vsel %vm219, %v263, 0.0
    %v266 = vrot.slane %v265, 4
    %v267 = vadd.f32 %v265, %v266
    %v268 = vrot.slane %v267, 2
    %v269 = vadd.f32 %v267, %v268
    %v270 = vrot.slane %v269, 1
    %v271 = vadd.f32 %v269, %v270
    %v272 = vmul.f32 %v271, 0.25
    %vm273 = vcmp.ge.f32.partialorder %v209, %v272
    %v274 = vsel %vm273, 1, 0
    %v275 = vcvt.s32.f32 %v274
    %v276 = vadd.f32 %v275, 0.01
    %v277 = vmul.f32 %v209, %v276
    %v278 = vmul.f32 %v205, %v277
    %v280 = vrot.slane %v278, 4
    %v282 = vsel %vm219, %v280, 0.0
    %v283 = vrot.slane %v282, 4
    %v284 = vadd.f32 %v282, %v283
    %v285 = vrot.slane %v284, 2
    %v286 = vadd.f32 %v284, %v285
    %v287 = vrot.slane %v286, 1
    %v288 = vadd.f32 %v286, %v287
    %v290 = vrot.slane %v277, 4
    %v292 = vsel %vm219, %v290, 0.0
    %v293 = vrot.slane %v292, 4
    %v294 = vadd.f32 %v292, %v293
    %v295 = vrot.slane %v294, 2
    %v296 = vadd.f32 %v294, %v295
    %v297 = vrot.slane %v296, 1
    %v298 = vadd.f32 %v296, %v297
    %v299 = vadd.f32 %v298, 1e-08
    %v300 = vrcp.pop %v299
    %v301 = vmul.f32 %v288, %v300
    %vm302 = vcmask 1040384
    %v303 = vsel %vm302, %v250, %v301
    %304 = vst [vmem:[#allocation2] sm:$0x3] %v303
    %v305 = vsel %vm302, %v218, %v261
    %vm306 = vcmask 9216
    %v307 = vsel %vm306, %v305, -inf
    %308 = vmax.xlane.f32.xlu0 %v307
    %v309 = vpop.xlane.xlu0 %308
    %v310 = vsub.f32 %v305, %v309
    %v311 = vmul.f32 %v310, 1.442695
    %v312 = vpow.pop %v311
    %v313 = vsel %vm306, %v312, 0.0
    %314 = vadd.xlane.f32.xlu0 %v313
    %v315 = vpop.xlane.xlu0 %314
    %v316 = vrcp.pop %v315
    %v317 = vmul.f32 %v312, %v316
    %319 = vrot.lane.b32.xlu0 %v317, 2
    %v320 = vpop.permute.xlu0 %319
    %vm322 = vcmask 15360
    %v323 = vsel %vm322, %v305, %v320
    %vm324 = vcmask 25600
    %325 = vst.msk [vmem:[%s7] sm:$0x3] %vm324, %v323
    // Predicated region
    $region30: #{cnn_forward.1} parent=1 // pred_check
      _
    $region31: #{cnn_forward.1} parent=1 // pred_check_branch
      %327 = sbr.rel (0) target = $region33
    $region32: #{cnn_forward.1} parent=1 // pred_region
      _
    $region33: #{cnn_forward.1} parent=1 // pred_fallthru
      _
    // Predicated region
    $region34: #{cnn_forward.1} parent=1 // pred_check
      _
    $region35: #{cnn_forward.1} parent=1 // pred_check_branch
      %329 = sbr.rel (0) target = $region37
    $region36: #{cnn_forward.1} parent=1 // pred_region
      %s331 = ssub.s32 32, 32
      %332 = vsyncadd [#allocation3], %s331
      %s334 = sshll.u32 [#allocation2], 4
      %s335 = int_to_ptr.vmem [resolvable:$true] %s334
      %337 = dma.vmem_to_hbm [thread:$0]  %s335, 32, %s8, [#allocation3]
    $region37: #{cnn_forward.1} parent=1 // pred_fallthru
      _
    // Predicated region
    $region38: #{cnn_forward.1} parent=1 // pred_check
      _
    $region39: #{cnn_forward.1} parent=1 // pred_check_branch
      %339 = sbr.rel (0) target = $region41
    $region40: #{cnn_forward.1} parent=1 // pred_region
      _
    $region41: #{cnn_forward.1} parent=1 // pred_fallthru
      _
    // Predicated region
    $region42: #{cnn_forward.1} parent=1 // pred_check
      _
    $region43: #{cnn_forward.1} parent=1 // pred_check_branch
      %341 = sbr.rel (0) target = $region45
    $region44: #{cnn_forward.1} parent=1 // pred_region
      %342 = dma.done [#allocation3], 32
    $region45: #{cnn_forward.1} parent=1 // pred_fallthru
      _
    %343 = vsyncpa [#allocation3], 1

</llo_original>
